<compile_context>
chip_gen: v5e
topology: v5e:2x2
jax: 0.10.0
libtpu: 0.0.40
codegen_flags: <defaults>
</compile_context>

<pallas_src>
import jax
import jax.numpy as jnp
from jax import lax
from jax.experimental import pallas as pl
from jax.experimental.pallas import tpu as pltpu


def screen2vec_kernel(ui_ref, len_ref, wih_ref, whh_ref, brnn_ref,
                      wlin_ref, blin_ref, o_ref):
    # ui_ref  : (S, M, D)   UI element embeddings, M = fused batch*trace tile
    # len_ref : (M, 1) i32  number of valid UI elements per (batch, trace) row
    # wih_ref : (D, D)      W_ih^T        whh_ref : (D, D)  W_hh^T
    # brnn_ref: (1, D)      b_ih + b_hh
    # wlin_ref: (D, D)      W_lin^T       blin_ref: (1, D)  b_lin
    # o_ref   : (M, D)      screen embeddings for this tile
    S, M, D = ui_ref.shape

    # Hoisted input projection: every (step, row) pair in a single MXU matmul,
    # bias broadcast folded in exactly once.
    x_all = ui_ref[...].reshape(S * M, D)
    pre_all = (jnp.dot(x_all, wih_ref[...], preferred_element_type=jnp.float32)
               + brnn_ref[...])                                   # (S*M, D)

    lens = len_ref[...]                                           # (M, 1), loaded once
    whh = whh_ref[...]

    # Recurrence: serial by construction, so a static unroll over S is fine.
    # Hidden state lives in vregs (no per-step VMEM store/load).
    h = jnp.zeros((M, D), jnp.float32)
    for s in range(S):
        pre = pre_all[s * M:(s + 1) * M, :] + jnp.dot(
            h, whh, preferred_element_type=jnp.float32)
        h_new = jnp.tanh(pre)
        # pack_padded_sequence semantics: rows with length <= s keep their hidden state.
        h = jnp.where(lens > s, h_new, h)

    o_ref[...] = (jnp.dot(h, wlin_ref[...], preferred_element_type=jnp.float32)
                  + blin_ref[...]).astype(o_ref.dtype)


def screen2vec_forward(UIs, descr, trace_screen_lengths, params, m_tile=None):
    """UIs: (B,S,T,D) f32; descr: (B,T,D) f32 (unused for version 5 + prediction=True);
    trace_screen_lengths: (B,T) int; returns (B,T,D) f32."""
    del descr  # desc_size == 0 for net_version=5, prediction=True
    B, S, T, D = UIs.shape
    M = B * T

    # Layout plumbing: fuse batch & trace axes into the matmul M axis.
    ui_f = jnp.transpose(UIs, (1, 0, 2, 3)).reshape(S, M, D)      # (S, B*T, D)
    lens_f = trace_screen_lengths.astype(jnp.int32).reshape(M, 1)  # (B*T, 1)

    wih_t = params["w_ih"].T
    whh_t = params["w_hh"].T
    brnn = (params["b_ih"] + params["b_hh"]).reshape(1, D)
    wlin_t = params["w_lin"].T
    blin = params["b_lin"].reshape(1, D)

    # Pick the largest MXU-friendly tile that divides the fused axis
    # (256 rows for v6e/v7x, 128 for v5e; small problems fall back to full M).
    if m_tile is None:
        m_tile = M
        for cand in (256, 128, 64, 32, 16, 8):
            if M % cand == 0:
                m_tile = cand
                break
    grid = (M // m_tile,)

    grid_spec = pltpu.PrefetchScalarGridSpec(
        num_scalar_prefetch=0,
        grid=grid,
        in_specs=[
            pl.BlockSpec((S, m_tile, D), lambda i: (0, i, 0)),   # UIs tile
            pl.BlockSpec((m_tile, 1), lambda i: (i, 0)),         # lengths tile
            pl.BlockSpec((D, D), lambda i: (0, 0)),              # W_ih^T (resident)
            pl.BlockSpec((D, D), lambda i: (0, 0)),              # W_hh^T (resident)
            pl.BlockSpec((1, D), lambda i: (0, 0)),              # b_rnn
            pl.BlockSpec((D, D), lambda i: (0, 0)),              # W_lin^T (resident)
            pl.BlockSpec((1, D), lambda i: (0, 0)),              # b_lin
        ],
        out_specs=pl.BlockSpec((m_tile, D), lambda i: (i, 0)),
    )

    out = pl.pallas_call(
        screen2vec_kernel,
        grid_spec=grid_spec,
        out_shape=jax.ShapeDtypeStruct((M, D), jnp.float32),
        compiler_params=pltpu.CompilerParams(dimension_semantics=("parallel",)),
    )(ui_f, lens_f, wih_t, whh_t, brnn, wlin_t, blin)

    return out.reshape(B, T, D)


def reference_forward(UIs, trace_screen_lengths, params):
    """Pure-JAX reference mirroring nn.RNN + pack_padded_sequence + nn.Linear."""
    B, S, T, D = UIs.shape

    def per_batch(ui_b, len_b):
        def step(h, inp):
            x, s = inp
            h_new = jnp.tanh(x @ params["w_ih"].T + params["b_ih"]
                             + h @ params["w_hh"].T + params["b_hh"])
            mask = (len_b > s)[:, None]
            return jnp.where(mask, h_new, h), None

        h0 = jnp.zeros((T, D), jnp.float32)
        h, _ = lax.scan(step, h0, (ui_b, jnp.arange(S)))
        return h @ params["w_lin"].T + params["b_lin"]

    return jax.vmap(per_batch)(UIs, trace_screen_lengths)


if __name__ == "__main__":
    # Small shapes consistent with the module (bert_size -> 128 for TPU lane alignment).
    B, S, T, D = 4, 5, 8, 128   # batch, screen_size (seq), trace_length (rnn batch), bert_size

    key = jax.random.PRNGKey(0)
    k_ui, k_len, k_descr, k1, k2, k3, k4, k5, k6 = jax.random.split(key, 9)

    # Deterministic parameter init (mimics nn.RNN / nn.Linear uniform(-1/sqrt(D), 1/sqrt(D))).
    bound = 1.0 / (D ** 0.5)
    params = {
        "w_ih": jax.random.uniform(k1, (D, D), jnp.float32, -bound, bound),
        "w_hh": jax.random.uniform(k2, (D, D), jnp.float32, -bound, bound),
        "b_ih": jax.random.uniform(k3, (D,), jnp.float32, -bound, bound),
        "b_hh": jax.random.uniform(k4, (D,), jnp.float32, -bound, bound),
        "w_lin": jax.random.uniform(k5, (D, D), jnp.float32, -bound, bound),
        "b_lin": jax.random.uniform(k6, (D,), jnp.float32, -bound, bound),
    }

    trace_screen_lengths = jax.random.randint(k_len, (B, T), 1, S + 1)   # lengths in [1, S]
    UIs = jax.random.normal(k_ui, (B, S, T, D), jnp.float32)
    # Zero-pad positions past each screen's length (as the real data would be).
    pad_mask = (jnp.arange(S)[None, :, None] < trace_screen_lengths[:, None, :]).astype(jnp.float32)
    UIs = UIs * pad_mask[..., None]
    descr = jax.random.normal(k_descr, (B, T, D), jnp.float32)  # unused for version 5

    out = screen2vec_forward(UIs, descr, trace_screen_lengths, params)
    jax.block_until_ready(out)

    ref = reference_forward(UIs, trace_screen_lengths, params)
    assert out.shape == (B, T, D)
    assert jnp.allclose(out, ref, rtol=1e-4, atol=1e-4), "Pallas kernel mismatch vs JAX reference"

    # TODO(synk): prediction=False path (torch.cat of descr onto the output) is plain
    # concatenation glue and is not part of the kernel hot path; omitted here.
    print("KERNEL_OK")
</pallas_src>

<mosaic_0001>
module attributes {stable_mosaic.version = 11 : i64} {
  func.func @screen2vec_kernel(%arg0: i32, %arg1: memref<5x32x128xf32, #tpu.memory_space<vmem>>, %arg2: memref<32x1xi32, #tpu.memory_space<vmem>>, %arg3: memref<128x128xf32, #tpu.memory_space<vmem>>, %arg4: memref<128x128xf32, #tpu.memory_space<vmem>>, %arg5: memref<1x128xf32, #tpu.memory_space<vmem>>, %arg6: memref<128x128xf32, #tpu.memory_space<vmem>>, %arg7: memref<1x128xf32, #tpu.memory_space<vmem>>, %arg8: memref<32x128xf32, #tpu.memory_space<vmem>>) attributes {dimension_semantics = [#tpu.dimension_semantics<parallel>], iteration_bounds = array<i64: 1>, scalar_prefetch = 0 : i64, scratch_operands = 0 : i64, tpu.core_type = #tpu.core_type<tc>, window_params = [{transform_indices = @transform_0, window_bounds = array<i64: 5, 32, 128>}, {transform_indices = @transform_1, window_bounds = array<i64: 32, 1>}, {pipeline_mode = #tpu.pipeline_mode<synchronous>, transform_indices = @transform_2, window_bounds = array<i64: 128, 128>}, {pipeline_mode = #tpu.pipeline_mode<synchronous>, transform_indices = @transform_3, window_bounds = array<i64: 128, 128>}, {pipeline_mode = #tpu.pipeline_mode<synchronous>, transform_indices = @transform_4, window_bounds = array<i64: 1, 128>}, {pipeline_mode = #tpu.pipeline_mode<synchronous>, transform_indices = @transform_5, window_bounds = array<i64: 128, 128>}, {pipeline_mode = #tpu.pipeline_mode<synchronous>, transform_indices = @transform_6, window_bounds = array<i64: 1, 128>}, {transform_indices = @transform_7, window_bounds = array<i64: 32, 128>}]} {
    %c0 = arith.constant 0 : index
    %c0_0 = arith.constant 0 : index
    %c0_1 = arith.constant 0 : index
    %0 = vector.load %arg1[%c0, %c0_0, %c0_1] : memref<5x32x128xf32, #tpu.memory_space<vmem>>, vector<5x32x128xf32>
    %1 = vector.shape_cast %0 : vector<5x32x128xf32> to vector<160x128xf32>
    %c0_2 = arith.constant 0 : index
    %c0_3 = arith.constant 0 : index
    %2 = vector.load %arg3[%c0_2, %c0_3] : memref<128x128xf32, #tpu.memory_space<vmem>>, vector<128x128xf32>
    %cst = arith.constant dense<0.000000e+00> : vector<160x128xf32>
    %3 = tpu.matmul %1, %2, %cst {dimension_numbers = #tpu.dot_dimension_numbers<[1], [0], [0], [1], [0, 0, 1, 1], [], []>} : vector<160x128xf32>, vector<128x128xf32>, vector<160x128xf32> -> vector<160x128xf32>
    %c0_4 = arith.constant 0 : index
    %c0_5 = arith.constant 0 : index
    %4 = vector.load %arg5[%c0_4, %c0_5] : memref<1x128xf32, #tpu.memory_space<vmem>>, vector<1x128xf32>
    %5 = vector.broadcast %4 : vector<1x128xf32> to vector<160x128xf32>
    %6 = arith.addf %3, %5 : vector<160x128xf32>
    %c0_6 = arith.constant 0 : index
    %c0_7 = arith.constant 0 : index
    %7 = vector.load %arg2[%c0_6, %c0_7] : memref<32x1xi32, #tpu.memory_space<vmem>>, vector<32x1xi32>
    %c0_8 = arith.constant 0 : index
    %c0_9 = arith.constant 0 : index
    %8 = vector.load %arg4[%c0_8, %c0_9] : memref<128x128xf32, #tpu.memory_space<vmem>>, vector<128x128xf32>
    %cst_10 = arith.constant 0.000000e+00 : f32
    %9 = vector.broadcast %cst_10 : f32 to vector<32x128xf32>
    %10 = vector.extract_strided_slice %6 {offsets = [0, 0], sizes = [32, 128], strides = [1, 1]} : vector<160x128xf32> to vector<32x128xf32>
    %cst_11 = arith.constant dense<0.000000e+00> : vector<32x128xf32>
    %11 = tpu.matmul %9, %8, %cst_11 {dimension_numbers = #tpu.dot_dimension_numbers<[1], [0], [0], [1], [0, 0, 1, 1], [], []>} : vector<32x128xf32>, vector<128x128xf32>, vector<32x128xf32> -> vector<32x128xf32>
    %12 = arith.addf %10, %11 : vector<32x128xf32>
    %13 = math.tanh %12 : vector<32x128xf32>
    %c0_i32 = arith.constant 0 : i32
    %14 = vector.broadcast %c0_i32 : i32 to vector<32x1xi32>
    %15 = arith.cmpi sgt, %7, %14 : vector<32x1xi32>
    %16 = vector.shape_cast %15 : vector<32x1xi1> to vector<32x1xi1>
    %17 = vector.broadcast %16 : vector<32x1xi1> to vector<32x128xi1>
    %18 = arith.select %17, %13, %9 : vector<32x128xi1>, vector<32x128xf32>
    %19 = vector.extract_strided_slice %6 {offsets = [32, 0], sizes = [32, 128], strides = [1, 1]} : vector<160x128xf32> to vector<32x128xf32>
    %cst_12 = arith.constant dense<0.000000e+00> : vector<32x128xf32>
    %20 = tpu.matmul %18, %8, %cst_12 {dimension_numbers = #tpu.dot_dimension_numbers<[1], [0], [0], [1], [0, 0, 1, 1], [], []>} : vector<32x128xf32>, vector<128x128xf32>, vector<32x128xf32> -> vector<32x128xf32>
    %21 = arith.addf %19, %20 : vector<32x128xf32>
    %22 = math.tanh %21 : vector<32x128xf32>
    %c1_i32 = arith.constant 1 : i32
    %23 = vector.broadcast %c1_i32 : i32 to vector<32x1xi32>
    %24 = arith.cmpi sgt, %7, %23 : vector<32x1xi32>
    %25 = vector.shape_cast %24 : vector<32x1xi1> to vector<32x1xi1>
    %26 = vector.broadcast %25 : vector<32x1xi1> to vector<32x128xi1>
    %27 = arith.select %26, %22, %18 : vector<32x128xi1>, vector<32x128xf32>
    %28 = vector.extract_strided_slice %6 {offsets = [64, 0], sizes = [32, 128], strides = [1, 1]} : vector<160x128xf32> to vector<32x128xf32>
    %cst_13 = arith.constant dense<0.000000e+00> : vector<32x128xf32>
    %29 = tpu.matmul %27, %8, %cst_13 {dimension_numbers = #tpu.dot_dimension_numbers<[1], [0], [0], [1], [0, 0, 1, 1], [], []>} : vector<32x128xf32>, vector<128x128xf32>, vector<32x128xf32> -> vector<32x128xf32>
    %30 = arith.addf %28, %29 : vector<32x128xf32>
    %31 = math.tanh %30 : vector<32x128xf32>
    %c2_i32 = arith.constant 2 : i32
    %32 = vector.broadcast %c2_i32 : i32 to vector<32x1xi32>
    %33 = arith.cmpi sgt, %7, %32 : vector<32x1xi32>
    %34 = vector.shape_cast %33 : vector<32x1xi1> to vector<32x1xi1>
    %35 = vector.broadcast %34 : vector<32x1xi1> to vector<32x128xi1>
    %36 = arith.select %35, %31, %27 : vector<32x128xi1>, vector<32x128xf32>
    %37 = vector.extract_strided_slice %6 {offsets = [96, 0], sizes = [32, 128], strides = [1, 1]} : vector<160x128xf32> to vector<32x128xf32>
    %cst_14 = arith.constant dense<0.000000e+00> : vector<32x128xf32>
    %38 = tpu.matmul %36, %8, %cst_14 {dimension_numbers = #tpu.dot_dimension_numbers<[1], [0], [0], [1], [0, 0, 1, 1], [], []>} : vector<32x128xf32>, vector<128x128xf32>, vector<32x128xf32> -> vector<32x128xf32>
    %39 = arith.addf %37, %38 : vector<32x128xf32>
    %40 = math.tanh %39 : vector<32x128xf32>
    %c3_i32 = arith.constant 3 : i32
    %41 = vector.broadcast %c3_i32 : i32 to vector<32x1xi32>
    %42 = arith.cmpi sgt, %7, %41 : vector<32x1xi32>
    %43 = vector.shape_cast %42 : vector<32x1xi1> to vector<32x1xi1>
    %44 = vector.broadcast %43 : vector<32x1xi1> to vector<32x128xi1>
    %45 = arith.select %44, %40, %36 : vector<32x128xi1>, vector<32x128xf32>
    %46 = vector.extract_strided_slice %6 {offsets = [128, 0], sizes = [32, 128], strides = [1, 1]} : vector<160x128xf32> to vector<32x128xf32>
    %cst_15 = arith.constant dense<0.000000e+00> : vector<32x128xf32>
    %47 = tpu.matmul %45, %8, %cst_15 {dimension_numbers = #tpu.dot_dimension_numbers<[1], [0], [0], [1], [0, 0, 1, 1], [], []>} : vector<32x128xf32>, vector<128x128xf32>, vector<32x128xf32> -> vector<32x128xf32>
    %48 = arith.addf %46, %47 : vector<32x128xf32>
    %49 = math.tanh %48 : vector<32x128xf32>
    %c4_i32 = arith.constant 4 : i32
    %50 = vector.broadcast %c4_i32 : i32 to vector<32x1xi32>
    %51 = arith.cmpi sgt, %7, %50 : vector<32x1xi32>
    %52 = vector.shape_cast %51 : vector<32x1xi1> to vector<32x1xi1>
    %53 = vector.broadcast %52 : vector<32x1xi1> to vector<32x128xi1>
    %54 = arith.select %53, %49, %45 : vector<32x128xi1>, vector<32x128xf32>
    %c0_16 = arith.constant 0 : index
    %c0_17 = arith.constant 0 : index
    %55 = vector.load %arg6[%c0_16, %c0_17] : memref<128x128xf32, #tpu.memory_space<vmem>>, vector<128x128xf32>
    %cst_18 = arith.constant dense<0.000000e+00> : vector<32x128xf32>
    %56 = tpu.matmul %54, %55, %cst_18 {dimension_numbers = #tpu.dot_dimension_numbers<[1], [0], [0], [1], [0, 0, 1, 1], [], []>} : vector<32x128xf32>, vector<128x128xf32>, vector<32x128xf32> -> vector<32x128xf32>
    %c0_19 = arith.constant 0 : index
    %c0_20 = arith.constant 0 : index
    %57 = vector.load %arg7[%c0_19, %c0_20] : memref<1x128xf32, #tpu.memory_space<vmem>>, vector<1x128xf32>
    %58 = vector.broadcast %57 : vector<1x128xf32> to vector<32x128xf32>
    %59 = arith.addf %56, %58 : vector<32x128xf32>
    %c0_21 = arith.constant 0 : index
    %c0_22 = arith.constant 0 : index
    %60 = vector.load %arg8[%c0_21, %c0_22] : memref<32x128xf32, #tpu.memory_space<vmem>>, vector<32x128xf32>
    tpu.vector_store %arg8[%c0_21, %c0_22], %59 {strides = array<i32>} : memref<32x128xf32, #tpu.memory_space<vmem>>, vector<32x128xf32>,
    return
  }
  func.func @transform_0(%arg0: i32) -> (i32, i32, i32) {
    %c0_i32 = arith.constant 0 : i32
    %c0_i32_0 = arith.constant 0 : i32
    %c0_i32_1 = arith.constant 0 : i32
    return %c0_i32, %arg0, %c0_i32_0 : i32, i32, i32
  }
  func.func @transform_1(%arg0: i32) -> (i32, i32) {
    %c0_i32 = arith.constant 0 : i32
    %c0_i32_0 = arith.constant 0 : i32
    return %arg0, %c0_i32 : i32, i32
  }
  func.func @transform_2(%arg0: i32) -> (i32, i32) {
    %c0_i32 = arith.constant 0 : i32
    %c0_i32_0 = arith.constant 0 : i32
    %c0_i32_1 = arith.constant 0 : i32
    return %c0_i32, %c0_i32_0 : i32, i32
  }
  func.func @transform_3(%arg0: i32) -> (i32, i32) {
    %c0_i32 = arith.constant 0 : i32
    %c0_i32_0 = arith.constant 0 : i32
    %c0_i32_1 = arith.constant 0 : i32
    return %c0_i32, %c0_i32_0 : i32, i32
  }
  func.func @transform_4(%arg0: i32) -> (i32, i32) {
    %c0_i32 = arith.constant 0 : i32
    %c0_i32_0 = arith.constant 0 : i32
    %c0_i32_1 = arith.constant 0 : i32
    return %c0_i32, %c0_i32_0 : i32, i32
  }
  func.func @transform_5(%arg0: i32) -> (i32, i32) {
    %c0_i32 = arith.constant 0 : i32
    %c0_i32_0 = arith.constant 0 : i32
    %c0_i32_1 = arith.constant 0 : i32
    return %c0_i32, %c0_i32_0 : i32, i32
  }
  func.func @transform_6(%arg0: i32) -> (i32, i32) {
    %c0_i32 = arith.constant 0 : i32
    %c0_i32_0 = arith.constant 0 : i32
    %c0_i32_1 = arith.constant 0 : i32
    return %c0_i32, %c0_i32_0 : i32, i32
  }
  func.func @transform_7(%arg0: i32) -> (i32, i32) {
    %c0_i32 = arith.constant 0 : i32
    %c0_i32_0 = arith.constant 0 : i32
    return %arg0, %c0_i32 : i32, i32
  }
}

</mosaic_0001>

<llo_original>
// kernel: tpu_custom_call.1
$region0: #{tpu_custom_call.1}
  #allocation0 [shape = 'u32[]', space=smem, size = 0x4, offset = 0x4, fixed_abs, tag = 'smem constant byte address 0x4 - core index']
  #allocation1 [shape = 'u32[72,128]{1,0:T(1,128)}', space=vmem, size = 0x9000, scoped, tag = 'internal scratch']
  %s0 = inlined_call_operand.hbm [shape: f32[5,32,128], index: 0, kind: input, shape index: {}]
  %s1 = inlined_call_operand.vmem [shape: s32[32,1], index: 1, kind: input, shape index: {}]
  %s2 = inlined_call_operand.hbm [shape: f32[128,128], index: 2, kind: input, shape index: {}]
  %s3 = inlined_call_operand.hbm [shape: f32[128,128], index: 3, kind: input, shape index: {}]
  %s4 = inlined_call_operand.vmem [shape: f32[1,128], index: 4, kind: input, shape index: {}]
  %s5 = inlined_call_operand.hbm [shape: f32[128,128], index: 5, kind: input, shape index: {}]
  %s6 = inlined_call_operand.vmem [shape: f32[1,128], index: 6, kind: input, shape index: {}]
  %s7 = inlined_call_operand.hbm [shape: f32[32,128], index: 7, kind: output, shape index: {}]
  %s8 = sld [smem:[#allocation0]]
  $region54: #{tpu_custom_call.1} parent=0
    _
  %s10 = ssub.s32 1, %s8
  %s11 = scalar_select 0, %s10, %s8
  $region1: #{tpu_custom_call.1} parent=0
    #allocation2 [shape = 'u8[81920]{0}', space=vmem, size = 0x14000, scoped, tag = 'input window, operand 0, single buffered']
    #allocation3 [shape = 's32[1]{0}', space=sflag, size = 0x4, scoped, tag = 'scoped memory for tpu_custom_call.1']
    #allocation4 [shape = 's32[1]{0}', space=sflag, size = 0x4, scoped, tag = 'scoped memory for tpu_custom_call.1']
    #allocation5 [shape = 'u8[65536]{0}', space=vmem, size = 0x10000, scoped, tag = 'input window, operand 2, single buffered']
    #allocation6 [shape = 's32[1]{0}', space=sflag, size = 0x4, scoped, tag = 'scoped memory for tpu_custom_call.1']
    #allocation7 [shape = 'u8[65536]{0}', space=vmem, size = 0x10000, scoped, tag = 'input window, operand 3, single buffered']
    #allocation8 [shape = 'u8[65536]{0}', space=vmem, size = 0x10000, scoped, tag = 'input window, operand 5, single buffered']
    #allocation9 [shape = 's32[1]{0}', space=sflag, size = 0x4, scoped, tag = 'scoped memory for tpu_custom_call.1']
    #allocation10 [shape = 'u8[16384]{0}', space=vmem, size = 0x4000, scoped, tag = 'output window, operand 0, single buffered']
    %12 = vsyncpa [#allocation3], 0
    %13 = vsyncpa [#allocation6], 0
    %14 = vsyncpa [#allocation9], 0
    %15 = vsyncpa [#allocation4], 0
    // Predicated region
    $region2: #{tpu_custom_call.1} parent=1 // pred_check
      _
    $region3: #{tpu_custom_call.1} parent=1 // pred_check_branch
      %17 = sbr.rel (0) target = $region5
    $region4: #{tpu_custom_call.1} parent=1 // pred_region
      %19 = vsyncadd [#allocation3], 0
      %s20 = sshll.u32 %s0, 4
      %s21 = int_to_ptr.hbm [resolvable:$true] %s20
      %s22 = sshll.u32 [#allocation2], 4
      %s23 = int_to_ptr.vmem [resolvable:$true] %s22
      %28 = dma.hbm_to_vmem [thread:$0]  %s21, 2560, %s23, [#allocation3], 128, 128, 8
    $region5: #{tpu_custom_call.1} parent=1 // pred_fallthru
      _
    // Predicated region
    $region6: #{tpu_custom_call.1} parent=1 // pred_check
      _
    $region7: #{tpu_custom_call.1} parent=1 // pred_check_branch
      %30 = sbr.rel (0) target = $region9
    $region8: #{tpu_custom_call.1} parent=1 // pred_region
      _
    $region9: #{tpu_custom_call.1} parent=1 // pred_fallthru
      _
    // Predicated region
    $region10: #{tpu_custom_call.1} parent=1 // pred_check
      _
    $region11: #{tpu_custom_call.1} parent=1 // pred_check_branch
      %32 = sbr.rel (0) target = $region13
    $region12: #{tpu_custom_call.1} parent=1 // pred_region
      %34 = vsyncadd [#allocation6], 0
      %s35 = sshll.u32 %s2, 4
      %s36 = int_to_ptr.hbm [resolvable:$true] %s35
      %s37 = sshll.u32 [#allocation5], 4
      %s38 = int_to_ptr.vmem [resolvable:$true] %s37
      %43 = dma.hbm_to_vmem [thread:$0]  %s36, 2048, %s38, [#allocation6], 128, 128, 8
    $region13: #{tpu_custom_call.1} parent=1 // pred_fallthru
      _
    // Predicated region
    $region14: #{tpu_custom_call.1} parent=1 // pred_check
      _
    $region15: #{tpu_custom_call.1} parent=1 // pred_check_branch
      %45 = sbr.rel (0) target = $region17
    $region16: #{tpu_custom_call.1} parent=1 // pred_region
      %47 = vsyncadd [#allocation6], 0
      %s48 = sshll.u32 %s3, 4
      %s49 = int_to_ptr.hbm [resolvable:$true] %s48
      %s50 = sshll.u32 [#allocation7], 4
      %s51 = int_to_ptr.vmem [resolvable:$true] %s50
      %56 = dma.hbm_to_vmem [thread:$0]  %s49, 2048, %s51, [#allocation6], 128, 128, 8
    $region17: #{tpu_custom_call.1} parent=1 // pred_fallthru
      _
    // Predicated region
    $region18: #{tpu_custom_call.1} parent=1 // pred_check
      _
    $region19: #{tpu_custom_call.1} parent=1 // pred_check_branch
      %58 = sbr.rel (0) target = $region21
    $region20: #{tpu_custom_call.1} parent=1 // pred_region
      _
    $region21: #{tpu_custom_call.1} parent=1 // pred_fallthru
      _
    // Predicated region
    $region22: #{tpu_custom_call.1} parent=1 // pred_check
      _
    $region23: #{tpu_custom_call.1} parent=1 // pred_check_branch
      %60 = sbr.rel (0) target = $region25
    $region24: #{tpu_custom_call.1} parent=1 // pred_region
      %62 = vsyncadd [#allocation9], 0
      %s63 = sshll.u32 %s5, 4
      %s64 = int_to_ptr.hbm [resolvable:$true] %s63
      %s65 = sshll.u32 [#allocation8], 4
      %s66 = int_to_ptr.vmem [resolvable:$true] %s65
      %71 = dma.hbm_to_vmem [thread:$0]  %s64, 2048, %s66, [#allocation9], 128, 128, 8
    $region25: #{tpu_custom_call.1} parent=1 // pred_fallthru
      _
    // Predicated region
    $region26: #{tpu_custom_call.1} parent=1 // pred_check
      _
    $region27: #{tpu_custom_call.1} parent=1 // pred_check_branch
      %73 = sbr.rel (0) target = $region29
    $region28: #{tpu_custom_call.1} parent=1 // pred_region
      _
    $region29: #{tpu_custom_call.1} parent=1 // pred_fallthru
      _
    // Predicated region
    $region30: #{tpu_custom_call.1} parent=1 // pred_check
      _
    $region31: #{tpu_custom_call.1} parent=1 // pred_check_branch
      %75 = sbr.rel (0) target = $region33
    $region32: #{tpu_custom_call.1} parent=1 // pred_region
      %77 = dma.done [#allocation3], 2560
    $region33: #{tpu_custom_call.1} parent=1 // pred_fallthru
      _
    // Predicated region
    $region34: #{tpu_custom_call.1} parent=1 // pred_check
      _
    $region35: #{tpu_custom_call.1} parent=1 // pred_check_branch
      %79 = sbr.rel (0) target = $region37
    $region36: #{tpu_custom_call.1} parent=1 // pred_region
      %81 = dma.done [#allocation6], 2048
    $region37: #{tpu_custom_call.1} parent=1 // pred_fallthru
      _
    // Predicated region
    $region38: #{tpu_custom_call.1} parent=1 // pred_check
      _
    $region39: #{tpu_custom_call.1} parent=1 // pred_check_branch
      %83 = sbr.rel (0) target = $region41
    $region40: #{tpu_custom_call.1} parent=1 // pred_region
      %85 = dma.done [#allocation6], 2048
    $region41: #{tpu_custom_call.1} parent=1 // pred_fallthru
      _
    // Predicated region
    $region42: #{tpu_custom_call.1} parent=1 // pred_check
      _
    $region43: #{tpu_custom_call.1} parent=1 // pred_check_branch
      %87 = sbr.rel (0) target = $region45
    $region44: #{tpu_custom_call.1} parent=1 // pred_region
      %89 = dma.done [#allocation9], 2048
    $region45: #{tpu_custom_call.1} parent=1 // pred_fallthru
      _
    %v90 = vld [vmem:[#allocation2] sm:$0xff]
    %v91 = vld [vmem:[#allocation2 + $0x8] sm:$0xff]
    %v92 = vld [vmem:[#allocation2 + $0x10] sm:$0xff]
    %v93 = vld [vmem:[#allocation2 + $0x18] sm:$0xff]
    %v94 = vld [vmem:[#allocation2 + $0x20] sm:$0xff]
    %v95 = vld [vmem:[#allocation2 + $0x28] sm:$0xff]
    %v96 = vld [vmem:[#allocation2 + $0x30] sm:$0xff]
    %v97 = vld [vmem:[#allocation2 + $0x38] sm:$0xff]
    %v98 = vld [vmem:[#allocation2 + $0x40] sm:$0xff]
    %v99 = vld [vmem:[#allocation2 + $0x48] sm:$0xff]
    %v100 = vld [vmem:[#allocation2 + $0x50] sm:$0xff]
    %v101 = vld [vmem:[#allocation2 + $0x58] sm:$0xff]
    %v102 = vld [vmem:[#allocation2 + $0x60] sm:$0xff]
    %v103 = vld [vmem:[#allocation2 + $0x68] sm:$0xff]
    %v104 = vld [vmem:[#allocation2 + $0x70] sm:$0xff]
    %v105 = vld [vmem:[#allocation2 + $0x78] sm:$0xff]
    %v106 = vld [vmem:[#allocation2 + $0x80] sm:$0xff]
    %v107 = vld [vmem:[#allocation2 + $0x88] sm:$0xff]
    %v108 = vld [vmem:[#allocation2 + $0x90] sm:$0xff]
    %v109 = vld [vmem:[#allocation2 + $0x98] sm:$0xff]
    %v110 = vld [vmem:[#allocation5] sm:$0xff]
    %v111 = vld [vmem:[#allocation5 + $0x8] sm:$0xff]
    %v112 = vld [vmem:[#allocation5 + $0x10] sm:$0xff]
    %v113 = vld [vmem:[#allocation5 + $0x18] sm:$0xff]
    %v114 = vld [vmem:[#allocation5 + $0x20] sm:$0xff]
    %v115 = vld [vmem:[#allocation5 + $0x28] sm:$0xff]
    %v116 = vld [vmem:[#allocation5 + $0x30] sm:$0xff]
    %v117 = vld [vmem:[#allocation5 + $0x38] sm:$0xff]
    %v118 = vld [vmem:[#allocation5 + $0x40] sm:$0xff]
    %v119 = vld [vmem:[#allocation5 + $0x48] sm:$0xff]
    %v120 = vld [vmem:[#allocation5 + $0x50] sm:$0xff]
    %v121 = vld [vmem:[#allocation5 + $0x58] sm:$0xff]
    %v122 = vld [vmem:[#allocation5 + $0x60] sm:$0xff]
    %v123 = vld [vmem:[#allocation5 + $0x68] sm:$0xff]
    %v124 = vld [vmem:[#allocation5 + $0x70] sm:$0xff]
    %v125 = vld [vmem:[#allocation5 + $0x78] sm:$0xff]
    %v126 = vld [vmem:[%s4] sm:$0x1]
    %v128 = vperm.slane %v126, 0
    %130 = vmatpush.msra.mxu0 %v125
    %131 = vmatpush.msra.mxu0 %v124
    %132 = vmatpush.msra.mxu0 %v123
    %133 = vmatpush.msra.mxu0 %v122
    %134 = vmatpush.msra.mxu0 %v121
    %135 = vmatpush.msra.mxu0 %v120
    %136 = vmatpush.msra.mxu0 %v119
    %137 = vmatpush.msra.mxu0 %v118
    %138 = vmatpush.msra.mxu0 %v117
    %139 = vmatpush.msra.mxu0 %v116
    %140 = vmatpush.msra.mxu0 %v115
    %141 = vmatpush.msra.mxu0 %v114
    %142 = vmatpush.msra.mxu0 %v113
    %143 = vmatpush.msra.mxu0 %v112
    %144 = vmatpush.msra.mxu0 %v111
    %145 = vmatpush.msra.mxu0 %v110
    %146 = vmatmul.f32.gmra.mxu0 %v90
    %v147 = vpop.f32.mrf.mxu0
    %v148 = vadd.f32 %v128, %v147
    %149 = vmatmul.f32.gmra.mxu0 %v91
    %v150 = vpop.f32.mrf.mxu0
    %v151 = vadd.f32 %v128, %v150
    %152 = vmatmul.f32.gmra.mxu0 %v92
    %v153 = vpop.f32.mrf.mxu0
    %v154 = vadd.f32 %v128, %v153
    %155 = vmatmul.f32.gmra.mxu0 %v93
    %v156 = vpop.f32.mrf.mxu0
    %v157 = vadd.f32 %v128, %v156
    %158 = vmatmul.f32.gmra.mxu0 %v94
    %v159 = vpop.f32.mrf.mxu0
    %v160 = vadd.f32 %v128, %v159
    %161 = vmatmul.f32.gmra.mxu0 %v95
    %v162 = vpop.f32.mrf.mxu0
    %v163 = vadd.f32 %v128, %v162
    %164 = vmatmul.f32.gmra.mxu0 %v96
    %v165 = vpop.f32.mrf.mxu0
    %v166 = vadd.f32 %v128, %v165
    %167 = vmatmul.f32.gmra.mxu0 %v97
    %v168 = vpop.f32.mrf.mxu0
    %v169 = vadd.f32 %v128, %v168
    %170 = vmatmul.f32.gmra.mxu0 %v98
    %v171 = vpop.f32.mrf.mxu0
    %v172 = vadd.f32 %v128, %v171
    %173 = vmatmul.f32.gmra.mxu0 %v99
    %v174 = vpop.f32.mrf.mxu0
    %v175 = vadd.f32 %v128, %v174
    %176 = vmatmul.f32.gmra.mxu0 %v100
    %v177 = vpop.f32.mrf.mxu0
    %v178 = vadd.f32 %v128, %v177
    %179 = vmatmul.f32.gmra.mxu0 %v101
    %v180 = vpop.f32.mrf.mxu0
    %v181 = vadd.f32 %v128, %v180
    %182 = vmatmul.f32.gmra.mxu0 %v102
    %v183 = vpop.f32.mrf.mxu0
    %v184 = vadd.f32 %v128, %v183
    %185 = vmatmul.f32.gmra.mxu0 %v103
    %v186 = vpop.f32.mrf.mxu0
    %v187 = vadd.f32 %v128, %v186
    %188 = vmatmul.f32.gmra.mxu0 %v104
    %v189 = vpop.f32.mrf.mxu0
    %v190 = vadd.f32 %v128, %v189
    %191 = vmatmul.f32.gmra.mxu0 %v105
    %v192 = vpop.f32.mrf.mxu0
    %v193 = vadd.f32 %v128, %v192
    %194 = vmatmul.f32.gmra.mxu0 %v106
    %v195 = vpop.f32.mrf.mxu0
    %v196 = vadd.f32 %v128, %v195
    %197 = vmatmul.f32.gmra.mxu0 %v107
    %v198 = vpop.f32.mrf.mxu0
    %v199 = vadd.f32 %v128, %v198
    %200 = vmatmul.f32.gmra.mxu0 %v108
    %v201 = vpop.f32.mrf.mxu0
    %v202 = vadd.f32 %v128, %v201
    %203 = vmatmul.f32.gmra.mxu0 %v109
    %v204 = vpop.f32.mrf.mxu0
    %v205 = vadd.f32 %v128, %v204
    %206 = vdwg.mxu0
    %v207 = vld [vmem:[%s1] sm:$0xff]
    %v208 = vld [vmem:[%s1 + $0x8] sm:$0xff]
    %v209 = vld [vmem:[%s1 + $0x10] sm:$0xff]
    %v210 = vld [vmem:[%s1 + $0x18] sm:$0xff]
    %v211 = vld [vmem:[#allocation7] sm:$0xff]
    %v212 = vld [vmem:[#allocation7 + $0x8] sm:$0xff]
    %v213 = vld [vmem:[#allocation7 + $0x10] sm:$0xff]
    %v214 = vld [vmem:[#allocation7 + $0x18] sm:$0xff]
    %v215 = vld [vmem:[#allocation7 + $0x20] sm:$0xff]
    %v216 = vld [vmem:[#allocation7 + $0x28] sm:$0xff]
    %v217 = vld [vmem:[#allocation7 + $0x30] sm:$0xff]
    %v218 = vld [vmem:[#allocation7 + $0x38] sm:$0xff]
    %v219 = vld [vmem:[#allocation7 + $0x40] sm:$0xff]
    %v220 = vld [vmem:[#allocation7 + $0x48] sm:$0xff]
    %v221 = vld [vmem:[#allocation7 + $0x50] sm:$0xff]
    %v222 = vld [vmem:[#allocation7 + $0x58] sm:$0xff]
    %v223 = vld [vmem:[#allocation7 + $0x60] sm:$0xff]
    %v224 = vld [vmem:[#allocation7 + $0x68] sm:$0xff]
    %v225 = vld [vmem:[#allocation7 + $0x70] sm:$0xff]
    %v226 = vld [vmem:[#allocation7 + $0x78] sm:$0xff]
    %227 = vmatpush.msra.mxu0 %v226
    %228 = vmatpush.msra.mxu0 %v225
    %229 = vmatpush.msra.mxu0 %v224
    %230 = vmatpush.msra.mxu0 %v223
    %231 = vmatpush.msra.mxu0 %v222
    %232 = vmatpush.msra.mxu0 %v221
    %233 = vmatpush.msra.mxu0 %v220
    %234 = vmatpush.msra.mxu0 %v219
    %235 = vmatpush.msra.mxu0 %v218
    %236 = vmatpush.msra.mxu0 %v217
    %237 = vmatpush.msra.mxu0 %v216
    %238 = vmatpush.msra.mxu0 %v215
    %239 = vmatpush.msra.mxu0 %v214
    %240 = vmatpush.msra.mxu0 %v213
    %241 = vmatpush.msra.mxu0 %v212
    %242 = vmatpush.msra.mxu0 %v211
    %243 = vmatmul.f32.gmra.mxu0 0.0
    %v244 = vpop.f32.mrf.mxu0
    %v245 = vadd.f32 0.0, %v244
    %246 = vmatmul.f32.gmra.mxu0 0.0
    %v247 = vpop.f32.mrf.mxu0
    %v248 = vadd.f32 0.0, %v247
    %249 = vmatmul.f32.gmra.mxu0 0.0
    %v250 = vpop.f32.mrf.mxu0
    %v251 = vadd.f32 0.0, %v250
    %252 = vmatmul.f32.gmra.mxu0 0.0
    %v253 = vpop.f32.mrf.mxu0
    %v254 = vadd.f32 0.0, %v253
    %255 = vdwg.mxu0
    %v256 = vadd.f32 %v148, %v245
    %v257 = vadd.f32 %v151, %v248
    %v258 = vadd.f32 %v154, %v251
    %v259 = vadd.f32 %v157, %v254
    %v260 = vtanh.pop %v256
    %v261 = vtanh.pop %v257
    %v262 = vtanh.pop %v258
    %v263 = vtanh.pop %v259
    %vm264 = vcmp.gt.s32.totalorder %v207, 0
    %vm265 = vcmp.gt.s32.totalorder %v208, 0
    %vm266 = vcmp.gt.s32.totalorder %v209, 0
    %vm267 = vcmp.gt.s32.totalorder %v210, 0
    %v268 = vsel %vm264, 1, 0
    %v269 = vsel %vm265, 1, 0
    %v270 = vsel %vm266, 1, 0
    %v271 = vsel %vm267, 1, 0
    %272 = vset.pattern.permute.xlu0 0
    %273 = vperm.xlu0 %272, %v268
    %v274 = vpop.permute.xlu0 %273
    %275 = vset.pattern.permute.xlu0 0
    %276 = vperm.xlu0 %275, %v269
    %v277 = vpop.permute.xlu0 %276
    %278 = vset.pattern.permute.xlu0 0
    %279 = vperm.xlu0 %278, %v270
    %v280 = vpop.permute.xlu0 %279
    %281 = vset.pattern.permute.xlu0 0
    %282 = vperm.xlu0 %281, %v271
    %v283 = vpop.permute.xlu0 %282
    %vm284 = vcmp.eq.s32.totalorder %v274, 1
    %vm285 = vcmp.eq.s32.totalorder %v277, 1
    %vm286 = vcmp.eq.s32.totalorder %v280, 1
    %vm287 = vcmp.eq.s32.totalorder %v283, 1
    %v288 = vsel %vm284, %v260, 0.0
    %v289 = vsel %vm285, %v261, 0.0
    %v290 = vsel %vm286, %v262, 0.0
    %v291 = vsel %vm287, %v263, 0.0
    %292 = vmatpush.msra.mxu0 %v226
    %293 = vmatpush.msra.mxu0 %v225
    %294 = vmatpush.msra.mxu0 %v224
    %295 = vmatpush.msra.mxu0 %v223
    %296 = vmatpush.msra.mxu0 %v222
    %297 = vmatpush.msra.mxu0 %v221
    %298 = vmatpush.msra.mxu0 %v220
    %299 = vmatpush.msra.mxu0 %v219
    %300 = vmatpush.msra.mxu0 %v218
    %301 = vmatpush.msra.mxu0 %v217
    %302 = vmatpush.msra.mxu0 %v216
    %303 = vmatpush.msra.mxu0 %v215
    %304 = vmatpush.msra.mxu0 %v214
    %305 = vmatpush.msra.mxu0 %v213
    %306 = vmatpush.msra.mxu0 %v212
    %307 = vmatpush.msra.mxu0 %v211
    %308 = vmatmul.f32.gmra.mxu0 %v288
    %v309 = vpop.f32.mrf.mxu0
    %v310 = vadd.f32 0.0, %v309
    %311 = vmatmul.f32.gmra.mxu0 %v289
    %v312 = vpop.f32.mrf.mxu0
    %v313 = vadd.f32 0.0, %v312
    %314 = vmatmul.f32.gmra.mxu0 %v290
    %v315 = vpop.f32.mrf.mxu0
    %v316 = vadd.f32 0.0, %v315
    %317 = vmatmul.f32.gmra.mxu0 %v291
    %v318 = vpop.f32.mrf.mxu0
    %v319 = vadd.f32 0.0, %v318
    %320 = vdwg.mxu0
    %v321 = vadd.f32 %v160, %v310
    %v322 = vadd.f32 %v163, %v313
    %v323 = vadd.f32 %v166, %v316
    %v324 = vadd.f32 %v169, %v319
    %v325 = vtanh.pop %v321
    %v326 = vtanh.pop %v322
    %v327 = vtanh.pop %v323
    %v328 = vtanh.pop %v324
    %vm329 = vcmp.gt.s32.totalorder %v207, 1
    %vm330 = vcmp.gt.s32.totalorder %v208, 1
    %vm331 = vcmp.gt.s32.totalorder %v209, 1
    %vm332 = vcmp.gt.s32.totalorder %v210, 1
    %v333 = vsel %vm329, 1, 0
    %v334 = vsel %vm330, 1, 0
    %v335 = vsel %vm331, 1, 0
    %v336 = vsel %vm332, 1, 0
    %337 = vset.pattern.permute.xlu0 0
    %338 = vperm.xlu0 %337, %v333
    %v339 = vpop.permute.xlu0 %338
    %340 = vset.pattern.permute.xlu0 0
    %341 = vperm.xlu0 %340, %v334
    %v342 = vpop.permute.xlu0 %341
    %343 = vset.pattern.permute.xlu0 0
    %344 = vperm.xlu0 %343, %v335
    %v345 = vpop.permute.xlu0 %344
    %346 = vset.pattern.permute.xlu0 0
    %347 = vperm.xlu0 %346, %v336
    %v348 = vpop.permute.xlu0 %347
    %vm349 = vcmp.eq.s32.totalorder %v339, 1
    %vm350 = vcmp.eq.s32.totalorder %v342, 1
    %vm351 = vcmp.eq.s32.totalorder %v345, 1
    %vm352 = vcmp.eq.s32.totalorder %v348, 1
    %v353 = vsel %vm349, %v325, %v288
    %v354 = vsel %vm350, %v326, %v289
    %v355 = vsel %vm351, %v327, %v290
    %v356 = vsel %vm352, %v328, %v291
    %357 = vmatpush.msra.mxu0 %v226
    %358 = vmatpush.msra.mxu0 %v225
    %359 = vmatpush.msra.mxu0 %v224
    %360 = vmatpush.msra.mxu0 %v223
    %361 = vmatpush.msra.mxu0 %v222
    %362 = vmatpush.msra.mxu0 %v221
    %363 = vmatpush.msra.mxu0 %v220
    %364 = vmatpush.msra.mxu0 %v219
    %365 = vmatpush.msra.mxu0 %v218
    %366 = vmatpush.msra.mxu0 %v217
    %367 = vmatpush.msra.mxu0 %v216
    %368 = vmatpush.msra.mxu0 %v215
    %369 = vmatpush.msra.mxu0 %v214
    %370 = vmatpush.msra.mxu0 %v213
    %371 = vmatpush.msra.mxu0 %v212
    %372 = vmatpush.msra.mxu0 %v211
    %373 = vmatmul.f32.gmra.mxu0 %v353
    %v374 = vpop.f32.mrf.mxu0
    %v375 = vadd.f32 0.0, %v374
    %376 = vmatmul.f32.gmra.mxu0 %v354
    %v377 = vpop.f32.mrf.mxu0
    %v378 = vadd.f32 0.0, %v377
    %379 = vmatmul.f32.gmra.mxu0 %v355
    %v380 = vpop.f32.mrf.mxu0
    %v381 = vadd.f32 0.0, %v380
    %382 = vmatmul.f32.gmra.mxu0 %v356
    %v383 = vpop.f32.mrf.mxu0
    %v384 = vadd.f32 0.0, %v383
    %385 = vdwg.mxu0
    %v386 = vadd.f32 %v172, %v375
    %v387 = vadd.f32 %v175, %v378
    %v388 = vadd.f32 %v178, %v381
    %v389 = vadd.f32 %v181, %v384
    %v390 = vtanh.pop %v386
    %v391 = vtanh.pop %v387
    %v392 = vtanh.pop %v388
    %v393 = vtanh.pop %v389
    %vm394 = vcmp.gt.s32.totalorder %v207, 2
    %vm395 = vcmp.gt.s32.totalorder %v208, 2
    %vm396 = vcmp.gt.s32.totalorder %v209, 2
    %vm397 = vcmp.gt.s32.totalorder %v210, 2
    %v398 = vsel %vm394, 1, 0
    %v399 = vsel %vm395, 1, 0
    %v400 = vsel %vm396, 1, 0
    %v401 = vsel %vm397, 1, 0
    %402 = vset.pattern.permute.xlu0 0
    %403 = vperm.xlu0 %402, %v398
    %v404 = vpop.permute.xlu0 %403
    %405 = vset.pattern.permute.xlu0 0
    %406 = vperm.xlu0 %405, %v399
    %v407 = vpop.permute.xlu0 %406
    %408 = vset.pattern.permute.xlu0 0
    %409 = vperm.xlu0 %408, %v400
    %v410 = vpop.permute.xlu0 %409
    %411 = vset.pattern.permute.xlu0 0
    %412 = vperm.xlu0 %411, %v401
    %v413 = vpop.permute.xlu0 %412
    %vm414 = vcmp.eq.s32.totalorder %v404, 1
    %vm415 = vcmp.eq.s32.totalorder %v407, 1
    %vm416 = vcmp.eq.s32.totalorder %v410, 1
    %vm417 = vcmp.eq.s32.totalorder %v413, 1
    %v418 = vsel %vm414, %v390, %v353
    %v419 = vsel %vm415, %v391, %v354
    %v420 = vsel %vm416, %v392, %v355
    %v421 = vsel %vm417, %v393, %v356
    %422 = vmatpush.msra.mxu0 %v226
    %423 = vmatpush.msra.mxu0 %v225
    %424 = vmatpush.msra.mxu0 %v224
    %425 = vmatpush.msra.mxu0 %v223
    %426 = vmatpush.msra.mxu0 %v222
    %427 = vmatpush.msra.mxu0 %v221
    %428 = vmatpush.msra.mxu0 %v220
    %429 = vmatpush.msra.mxu0 %v219
    %430 = vmatpush.msra.mxu0 %v218
    %431 = vmatpush.msra.mxu0 %v217
    %432 = vmatpush.msra.mxu0 %v216
    %433 = vmatpush.msra.mxu0 %v215
    %434 = vmatpush.msra.mxu0 %v214
    %435 = vmatpush.msra.mxu0 %v213
    %436 = vmatpush.msra.mxu0 %v212
    %437 = vmatpush.msra.mxu0 %v211
    %438 = vmatmul.f32.gmra.mxu0 %v418
    %v439 = vpop.f32.mrf.mxu0
    %v440 = vadd.f32 0.0, %v439
    %441 = vmatmul.f32.gmra.mxu0 %v419
    %v442 = vpop.f32.mrf.mxu0
    %v443 = vadd.f32 0.0, %v442
    %444 = vmatmul.f32.gmra.mxu0 %v420
    %v445 = vpop.f32.mrf.mxu0
    %v446 = vadd.f32 0.0, %v445
    %447 = vmatmul.f32.gmra.mxu0 %v421
    %v448 = vpop.f32.mrf.mxu0
    %v449 = vadd.f32 0.0, %v448
    %450 = vdwg.mxu0
    %v451 = vadd.f32 %v184, %v440
    %v452 = vadd.f32 %v187, %v443
    %v453 = vadd.f32 %v190, %v446
    %v454 = vadd.f32 %v193, %v449
    %v455 = vtanh.pop %v451
    %v456 = vtanh.pop %v452
    %v457 = vtanh.pop %v453
    %v458 = vtanh.pop %v454
    %vm459 = vcmp.gt.s32.totalorder %v207, 3
    %vm460 = vcmp.gt.s32.totalorder %v208, 3
    %vm461 = vcmp.gt.s32.totalorder %v209, 3
    %vm462 = vcmp.gt.s32.totalorder %v210, 3
    %v463 = vsel %vm459, 1, 0
    %v464 = vsel %vm460, 1, 0
    %v465 = vsel %vm461, 1, 0
    %v466 = vsel %vm462, 1, 0
    %467 = vset.pattern.permute.xlu0 0
    %468 = vperm.xlu0 %467, %v463
    %v469 = vpop.permute.xlu0 %468
    %470 = vset.pattern.permute.xlu0 0
    %471 = vperm.xlu0 %470, %v464
    %v472 = vpop.permute.xlu0 %471
    %473 = vset.pattern.permute.xlu0 0
    %474 = vperm.xlu0 %473, %v465
    %v475 = vpop.permute.xlu0 %474
    %476 = vset.pattern.permute.xlu0 0
    %477 = vperm.xlu0 %476, %v466
    %v478 = vpop.permute.xlu0 %477
    %vm479 = vcmp.eq.s32.totalorder %v469, 1
    %vm480 = vcmp.eq.s32.totalorder %v472, 1
    %vm481 = vcmp.eq.s32.totalorder %v475, 1
    %vm482 = vcmp.eq.s32.totalorder %v478, 1
    %v483 = vsel %vm479, %v455, %v418
    %v484 = vsel %vm480, %v456, %v419
    %v485 = vsel %vm481, %v457, %v420
    %v486 = vsel %vm482, %v458, %v421
    %487 = vmatpush.msra.mxu0 %v226
    %488 = vmatpush.msra.mxu0 %v225
    %489 = vmatpush.msra.mxu0 %v224
    %490 = vmatpush.msra.mxu0 %v223
    %491 = vmatpush.msra.mxu0 %v222
    %492 = vmatpush.msra.mxu0 %v221
    %493 = vmatpush.msra.mxu0 %v220
    %494 = vmatpush.msra.mxu0 %v219
    %495 = vmatpush.msra.mxu0 %v218
    %496 = vmatpush.msra.mxu0 %v217
    %497 = vmatpush.msra.mxu0 %v216
    %498 = vmatpush.msra.mxu0 %v215
    %499 = vmatpush.msra.mxu0 %v214
    %500 = vmatpush.msra.mxu0 %v213
    %501 = vmatpush.msra.mxu0 %v212
    %502 = vmatpush.msra.mxu0 %v211
    %503 = vmatmul.f32.gmra.mxu0 %v483
    %v504 = vpop.f32.mrf.mxu0
    %v505 = vadd.f32 0.0, %v504
    %506 = vmatmul.f32.gmra.mxu0 %v484
    %v507 = vpop.f32.mrf.mxu0
    %v508 = vadd.f32 0.0, %v507
    %509 = vmatmul.f32.gmra.mxu0 %v485
    %v510 = vpop.f32.mrf.mxu0
    %v511 = vadd.f32 0.0, %v510
    %512 = vmatmul.f32.gmra.mxu0 %v486
    %v513 = vpop.f32.mrf.mxu0
    %v514 = vadd.f32 0.0, %v513
    %515 = vdwg.mxu0
    %v516 = vadd.f32 %v196, %v505
    %v517 = vadd.f32 %v199, %v508
    %v518 = vadd.f32 %v202, %v511
    %v519 = vadd.f32 %v205, %v514
    %v520 = vtanh.pop %v516
    %v521 = vtanh.pop %v517
    %v522 = vtanh.pop %v518
    %v523 = vtanh.pop %v519
    %vm524 = vcmp.gt.s32.totalorder %v207, 4
    %vm525 = vcmp.gt.s32.totalorder %v208, 4
    %vm526 = vcmp.gt.s32.totalorder %v209, 4
    %vm527 = vcmp.gt.s32.totalorder %v210, 4
    %v528 = vsel %vm524, 1, 0
    %v529 = vsel %vm525, 1, 0
    %v530 = vsel %vm526, 1, 0
    %v531 = vsel %vm527, 1, 0
    %532 = vset.pattern.permute.xlu0 0
    %533 = vperm.xlu0 %532, %v528
    %v534 = vpop.permute.xlu0 %533
    %535 = vset.pattern.permute.xlu0 0
    %536 = vperm.xlu0 %535, %v529
    %v537 = vpop.permute.xlu0 %536
    %538 = vset.pattern.permute.xlu0 0
    %539 = vperm.xlu0 %538, %v530
    %v540 = vpop.permute.xlu0 %539
    %541 = vset.pattern.permute.xlu0 0
    %542 = vperm.xlu0 %541, %v531
    %v543 = vpop.permute.xlu0 %542
    %vm544 = vcmp.eq.s32.totalorder %v534, 1
    %vm545 = vcmp.eq.s32.totalorder %v537, 1
    %vm546 = vcmp.eq.s32.totalorder %v540, 1
    %vm547 = vcmp.eq.s32.totalorder %v543, 1
    %v548 = vsel %vm544, %v520, %v483
    %v549 = vsel %vm545, %v521, %v484
    %v550 = vsel %vm546, %v522, %v485
    %v551 = vsel %vm547, %v523, %v486
    %v552 = vld [vmem:[#allocation8] sm:$0xff]
    %v553 = vld [vmem:[#allocation8 + $0x8] sm:$0xff]
    %v554 = vld [vmem:[#allocation8 + $0x10] sm:$0xff]
    %v555 = vld [vmem:[#allocation8 + $0x18] sm:$0xff]
    %v556 = vld [vmem:[#allocation8 + $0x20] sm:$0xff]
    %v557 = vld [vmem:[#allocation8 + $0x28] sm:$0xff]
    %v558 = vld [vmem:[#allocation8 + $0x30] sm:$0xff]
    %v559 = vld [vmem:[#allocation8 + $0x38] sm:$0xff]
    %v560 = vld [vmem:[#allocation8 + $0x40] sm:$0xff]
    %v561 = vld [vmem:[#allocation8 + $0x48] sm:$0xff]
    %v562 = vld [vmem:[#allocation8 + $0x50] sm:$0xff]
    %v563 = vld [vmem:[#allocation8 + $0x58] sm:$0xff]
    %v564 = vld [vmem:[#allocation8 + $0x60] sm:$0xff]
    %v565 = vld [vmem:[#allocation8 + $0x68] sm:$0xff]
    %v566 = vld [vmem:[#allocation8 + $0x70] sm:$0xff]
    %v567 = vld [vmem:[#allocation8 + $0x78] sm:$0xff]
    %v568 = vld [vmem:[%s6] sm:$0x1]
    %v570 = vperm.slane %v568, 0
    %572 = vmatpush.msra.mxu0 %v567
    %573 = vmatpush.msra.mxu0 %v566
    %574 = vmatpush.msra.mxu0 %v565
    %575 = vmatpush.msra.mxu0 %v564
    %576 = vmatpush.msra.mxu0 %v563
    %577 = vmatpush.msra.mxu0 %v562
    %578 = vmatpush.msra.mxu0 %v561
    %579 = vmatpush.msra.mxu0 %v560
    %580 = vmatpush.msra.mxu0 %v559
    %581 = vmatpush.msra.mxu0 %v558
    %582 = vmatpush.msra.mxu0 %v557
    %583 = vmatpush.msra.mxu0 %v556
    %584 = vmatpush.msra.mxu0 %v555
    %585 = vmatpush.msra.mxu0 %v554
    %586 = vmatpush.msra.mxu0 %v553
    %587 = vmatpush.msra.mxu0 %v552
    %588 = vmatmul.f32.gmra.mxu0 %v548
    %v589 = vpop.f32.mrf.mxu0
    %v590 = vadd.f32 %v570, %v589
    %591 = vmatmul.f32.gmra.mxu0 %v549
    %v592 = vpop.f32.mrf.mxu0
    %v593 = vadd.f32 %v570, %v592
    %594 = vmatmul.f32.gmra.mxu0 %v550
    %v595 = vpop.f32.mrf.mxu0
    %v596 = vadd.f32 %v570, %v595
    %597 = vmatmul.f32.gmra.mxu0 %v551
    %v598 = vpop.f32.mrf.mxu0
    %v599 = vadd.f32 %v570, %v598
    %600 = vdwg.mxu0
    %601 = vst [vmem:[#allocation10] sm:$0xff] %v590
    %602 = vst [vmem:[#allocation10 + $0x8] sm:$0xff] %v593
    %603 = vst [vmem:[#allocation10 + $0x10] sm:$0xff] %v596
    %604 = vst [vmem:[#allocation10 + $0x18] sm:$0xff] %v599
    // Predicated region
    $region46: #{tpu_custom_call.1} parent=1 // pred_check
      _
    $region47: #{tpu_custom_call.1} parent=1 // pred_check_branch
      %606 = sbr.rel (0) target = $region49
    $region48: #{tpu_custom_call.1} parent=1 // pred_region
      %608 = vsyncadd [#allocation4], 0
      %s609 = sshll.u32 [#allocation10], 4
      %s610 = int_to_ptr.vmem [resolvable:$true] %s609
      %s611 = sshll.u32 %s7, 4
      %s612 = int_to_ptr.hbm [resolvable:$true] %s611
      %617 = dma.vmem_to_hbm [thread:$0]  %s610, 512, %s612, [#allocation4], 128, 128, 8
    $region49: #{tpu_custom_call.1} parent=1 // pred_fallthru
      _
    // Predicated region
    $region50: #{tpu_custom_call.1} parent=1 // pred_check
      _
    $region51: #{tpu_custom_call.1} parent=1 // pred_check_branch
      %619 = sbr.rel (0) target = $region53
    $region52: #{tpu_custom_call.1} parent=1 // pred_region
      %621 = dma.done [#allocation4], 512
    $region53: #{tpu_custom_call.1} parent=1 // pred_fallthru
      _
    %622 = vsyncpa [#allocation3], 1
    %623 = vsyncpa [#allocation6], 1
    %624 = vsyncpa [#allocation9], 1
    %625 = vsyncpa [#allocation4], 1

</llo_original>
